<compile_context>
chip_gen: v7x
topology: tpu7x:2x2x1
jax: 0.10.0
libtpu: 0.0.40
codegen_flags: <defaults>
</compile_context>

<pallas_src>
import functools

import jax
import jax.numpy as jnp
from jax.experimental import pallas as pl
from jax.experimental.pallas import tpu as pltpu

EPS = 1e-5
K_IN = 28 * 28         # 784
HID = 256
N_OUT = 10
N_PAD = 128            # lane-dense output slab width; sliced to 10 in the wrapper
DEFAULT_TILE_B = 1024  # multiple of 8 (f32 sublane); ~3.2 MB f32 x tile


def _round_up(x, m):
    return (x + m - 1) // m * m


def dense2_kernel(x_ref, w1_ref, b1_ref, w2_ref, b2_ref, w3_ref, b3_ref, o_ref):
    # x tile: (TILE_B, 784) f32 -> cast to bf16 in VMEM; weights bf16; biases f32;
    # MXU accumulates in f32.
    x = x_ref[...].astype(jnp.bfloat16)

    h1 = jnp.dot(x, w1_ref[...], preferred_element_type=jnp.float32) + b1_ref[...]
    h1 = jnp.maximum(h1, 0.0).astype(jnp.bfloat16)      # BN1 folded into w2/b2

    h2 = jnp.dot(h1, w2_ref[...], preferred_element_type=jnp.float32) + b2_ref[...]
    h2 = jnp.maximum(h2, 0.0).astype(jnp.bfloat16)      # BN2 folded into w3/b3

    # Dropout(p=0.5) in eval mode == identity.
    o_ref[...] = (
        jnp.dot(h2, w3_ref[...], preferred_element_type=jnp.float32) + b3_ref[...]
    ).astype(o_ref.dtype)


def fold_params(p):
    """Fold eval-mode BatchNorms into the following Linears, pad the output
    width to a lane-dense slab, and cast weights to bf16 (biases stay f32)."""
    s1 = p["g1"] / jnp.sqrt(p["v1"] + EPS)          # (1, 256)
    sh1 = p["be1"] - p["m1"] * s1
    s2 = p["g2"] / jnp.sqrt(p["v2"] + EPS)
    sh2 = p["be2"] - p["m2"] * s2

    w2f = p["w2"] * s1.T                            # diag(s1) @ w2
    b2f = p["b2"] + sh1 @ p["w2"]
    w3f = p["w3"] * s2.T                            # diag(s2) @ w3
    b3f = p["b3"] + sh2 @ p["w3"]

    w3p = jnp.zeros((HID, N_PAD), jnp.float32).at[:, :N_OUT].set(w3f)
    b3p = jnp.zeros((1, N_PAD), jnp.float32).at[:, :N_OUT].set(b3f)

    return dict(
        w1=p["w1"].astype(jnp.bfloat16), b1=p["b1"].astype(jnp.float32),
        w2=w2f.astype(jnp.bfloat16), b2=b2f.astype(jnp.float32),
        w3=w3p.astype(jnp.bfloat16), b3=b3p.astype(jnp.float32),
    )


@functools.partial(jax.jit, static_argnames=("tile_b",))
def dense2_forward(x, fp, tile_b=DEFAULT_TILE_B):
    """x: (B, 1, 28, 28) float32 (NCHW).  fp: fold_params output.
    Returns logits (B, 10) float32."""
    B = x.shape[0]
    x2d = x.reshape(B, K_IN)                          # nn.Flatten on NCHW (no copy)

    tb = min(tile_b, _round_up(B, 8))                 # f32 sublane packing
    Bp = _round_up(B, tb)
    if Bp != B:
        x2d = jnp.pad(x2d, ((0, Bp - B), (0, 0)))

    const = lambda i: (0, 0)                          # weights stay resident

    out = pl.pallas_call(
        dense2_kernel,
        out_shape=jax.ShapeDtypeStruct((Bp, N_PAD), jnp.float32),
        grid=(Bp // tb,),
        in_specs=[
            pl.BlockSpec((tb, K_IN), lambda i: (i, 0)),        # x tile (pipelined, f32)
            pl.BlockSpec((K_IN, HID), const),                  # w1
            pl.BlockSpec((1, HID), const),                     # b1
            pl.BlockSpec((HID, HID), const),                   # w2 (BN1 folded)
            pl.BlockSpec((1, HID), const),                     # b2 (BN1 folded)
            pl.BlockSpec((HID, N_PAD), const),                 # w3 (BN2 folded, padded)
            pl.BlockSpec((1, N_PAD), const),                   # b3 (BN2 folded, padded)
        ],
        out_specs=pl.BlockSpec((tb, N_PAD), lambda i: (i, 0)),
        compiler_params=pltpu.CompilerParams(
            dimension_semantics=("parallel",),
        ),
    )(x2d, fp["w1"], fp["b1"], fp["w2"], fp["b2"], fp["w3"], fp["b3"])

    return out[:B, :N_OUT]


def init_params(key):
    """Deterministic params matching Dense2's shapes.  Linear weights stored as
    (in, out) == torch_weight.T; biases (1, out); BN params (1, 256).  BN
    running stats / affine params are randomized so the host-side fold is
    exercised nontrivially."""
    ks = jax.random.split(key, 14)

    def lin(kw, kb, fan_in, fan_out):
        bound = 1.0 / jnp.sqrt(fan_in)
        w = jax.random.uniform(kw, (fan_in, fan_out), jnp.float32, -bound, bound)
        b = jax.random.uniform(kb, (1, fan_out), jnp.float32, -bound, bound)
        return w, b

    w1, b1 = lin(ks[0], ks[1], K_IN, HID)
    w2, b2 = lin(ks[2], ks[3], HID, HID)
    w3, b3 = lin(ks[4], ks[5], HID, N_OUT)

    def bn(kg, kb, km, kv, n):
        g = jax.random.uniform(kg, (1, n), jnp.float32, 0.5, 1.5)
        be = 0.1 * jax.random.normal(kb, (1, n), jnp.float32)
        m = 0.1 * jax.random.normal(km, (1, n), jnp.float32)
        v = jax.random.uniform(kv, (1, n), jnp.float32, 0.5, 1.5)
        return g, be, m, v

    g1, be1, m1, v1 = bn(ks[6], ks[7], ks[8], ks[9], HID)
    g2, be2, m2, v2 = bn(ks[10], ks[11], ks[12], ks[13], HID)

    return dict(
        w1=w1, b1=b1, g1=g1, be1=be1, m1=m1, v1=v1,
        w2=w2, b2=b2, g2=g2, be2=be2, m2=m2, v2=v2,
        w3=w3, b3=b3,
    )


def reference_forward(x, p):
    """Plain-JAX f32 reference of the original eval-mode forward (unfolded BN)."""
    B = x.shape[0]
    h = x.reshape(B, K_IN)
    h = jnp.maximum(h @ p["w1"] + p["b1"], 0.0)
    h = (h - p["m1"]) * jax.lax.rsqrt(p["v1"] + EPS) * p["g1"] + p["be1"]
    h = jnp.maximum(h @ p["w2"] + p["b2"], 0.0)
    h = (h - p["m2"]) * jax.lax.rsqrt(p["v2"] + EPS) * p["g2"] + p["be2"]
    return h @ p["w3"] + p["b3"]


if __name__ == "__main__":
    key = jax.random.PRNGKey(0)
    kx, kp = jax.random.split(key)

    B = 2
    x = jax.random.normal(kx, (B, 1, 28, 28), jnp.float32)   # NCHW, like PyTorch
    params = init_params(kp)
    folded = fold_params(params)

    logits = dense2_forward(x, folded)
    logits = jax.block_until_ready(logits)

    ref = reference_forward(x, params)
    assert logits.shape == (B, N_OUT)
    max_err = float(jnp.max(jnp.abs(logits - ref)))
    assert max_err < 5e-2, f"mismatch vs reference, max abs err {max_err}"

    print("KERNEL_OK")
</pallas_src>

<mosaic_0001>
module attributes {stable_mosaic.version = 11 : i64} {
  func.func @dense2_kernel(%arg0: i32, %arg1: memref<8x784xf32, #tpu.memory_space<vmem>>, %arg2: memref<784x256xbf16, #tpu.memory_space<vmem>>, %arg3: memref<1x256xf32, #tpu.memory_space<vmem>>, %arg4: memref<256x256xbf16, #tpu.memory_space<vmem>>, %arg5: memref<1x256xf32, #tpu.memory_space<vmem>>, %arg6: memref<256x128xbf16, #tpu.memory_space<vmem>>, %arg7: memref<1x128xf32, #tpu.memory_space<vmem>>, %arg8: memref<8x128xf32, #tpu.memory_space<vmem>>) attributes {dimension_semantics = [#tpu.dimension_semantics<parallel>], iteration_bounds = array<i64: 1>, scalar_prefetch = 0 : i64, scratch_operands = 0 : i64, tpu.core_type = #tpu.core_type<tc>, window_params = [{transform_indices = @transform_0, window_bounds = array<i64: 8, 784>}, {pipeline_mode = #tpu.pipeline_mode<synchronous>, transform_indices = @transform_1, window_bounds = array<i64: 784, 256>}, {pipeline_mode = #tpu.pipeline_mode<synchronous>, transform_indices = @transform_2, window_bounds = array<i64: 1, 256>}, {pipeline_mode = #tpu.pipeline_mode<synchronous>, transform_indices = @transform_3, window_bounds = array<i64: 256, 256>}, {pipeline_mode = #tpu.pipeline_mode<synchronous>, transform_indices = @transform_4, window_bounds = array<i64: 1, 256>}, {pipeline_mode = #tpu.pipeline_mode<synchronous>, transform_indices = @transform_5, window_bounds = array<i64: 256, 128>}, {pipeline_mode = #tpu.pipeline_mode<synchronous>, transform_indices = @transform_6, window_bounds = array<i64: 1, 128>}, {transform_indices = @transform_7, window_bounds = array<i64: 8, 128>}]} {
    %c0 = arith.constant 0 : index
    %c0_0 = arith.constant 0 : index
    %0 = vector.load %arg1[%c0, %c0_0] : memref<8x784xf32, #tpu.memory_space<vmem>>, vector<8x784xf32>
    %1 = arith.truncf %0 : vector<8x784xf32> to vector<8x784xbf16>
    %c0_1 = arith.constant 0 : index
    %c0_2 = arith.constant 0 : index
    %2 = vector.load %arg2[%c0_1, %c0_2] : memref<784x256xbf16, #tpu.memory_space<vmem>>, vector<784x256xbf16>
    %cst = arith.constant dense<0.000000e+00> : vector<8x256xf32>
    %3 = tpu.matmul %1, %2, %cst {dimension_numbers = #tpu.dot_dimension_numbers<[1], [0], [0], [1], [0, 0, 1, 1], [], []>} : vector<8x784xbf16>, vector<784x256xbf16>, vector<8x256xf32> -> vector<8x256xf32>
    %c0_3 = arith.constant 0 : index
    %c0_4 = arith.constant 0 : index
    %4 = vector.load %arg3[%c0_3, %c0_4] : memref<1x256xf32, #tpu.memory_space<vmem>>, vector<1x256xf32>
    %5 = vector.broadcast %4 : vector<1x256xf32> to vector<8x256xf32>
    %6 = arith.addf %3, %5 : vector<8x256xf32>
    %cst_5 = arith.constant 0.000000e+00 : f32
    %7 = vector.broadcast %cst_5 : f32 to vector<8x256xf32>
    %8 = arith.maximumf %6, %7 : vector<8x256xf32>
    %9 = arith.truncf %8 : vector<8x256xf32> to vector<8x256xbf16>
    %c0_6 = arith.constant 0 : index
    %c0_7 = arith.constant 0 : index
    %10 = vector.load %arg4[%c0_6, %c0_7] : memref<256x256xbf16, #tpu.memory_space<vmem>>, vector<256x256xbf16>
    %cst_8 = arith.constant dense<0.000000e+00> : vector<8x256xf32>
    %11 = tpu.matmul %9, %10, %cst_8 {dimension_numbers = #tpu.dot_dimension_numbers<[1], [0], [0], [1], [0, 0, 1, 1], [], []>} : vector<8x256xbf16>, vector<256x256xbf16>, vector<8x256xf32> -> vector<8x256xf32>
    %c0_9 = arith.constant 0 : index
    %c0_10 = arith.constant 0 : index
    %12 = vector.load %arg5[%c0_9, %c0_10] : memref<1x256xf32, #tpu.memory_space<vmem>>, vector<1x256xf32>
    %13 = vector.broadcast %12 : vector<1x256xf32> to vector<8x256xf32>
    %14 = arith.addf %11, %13 : vector<8x256xf32>
    %cst_11 = arith.constant 0.000000e+00 : f32
    %15 = vector.broadcast %cst_11 : f32 to vector<8x256xf32>
    %16 = arith.maximumf %14, %15 : vector<8x256xf32>
    %17 = arith.truncf %16 : vector<8x256xf32> to vector<8x256xbf16>
    %c0_12 = arith.constant 0 : index
    %c0_13 = arith.constant 0 : index
    %18 = vector.load %arg6[%c0_12, %c0_13] : memref<256x128xbf16, #tpu.memory_space<vmem>>, vector<256x128xbf16>
    %cst_14 = arith.constant dense<0.000000e+00> : vector<8x128xf32>
    %19 = tpu.matmul %17, %18, %cst_14 {dimension_numbers = #tpu.dot_dimension_numbers<[1], [0], [0], [1], [0, 0, 1, 1], [], []>} : vector<8x256xbf16>, vector<256x128xbf16>, vector<8x128xf32> -> vector<8x128xf32>
    %c0_15 = arith.constant 0 : index
    %c0_16 = arith.constant 0 : index
    %20 = vector.load %arg7[%c0_15, %c0_16] : memref<1x128xf32, #tpu.memory_space<vmem>>, vector<1x128xf32>
    %21 = vector.broadcast %20 : vector<1x128xf32> to vector<8x128xf32>
    %22 = arith.addf %19, %21 : vector<8x128xf32>
    %c0_17 = arith.constant 0 : index
    %c0_18 = arith.constant 0 : index
    %23 = vector.load %arg8[%c0_17, %c0_18] : memref<8x128xf32, #tpu.memory_space<vmem>>, vector<8x128xf32>
    tpu.vector_store %arg8[%c0_17, %c0_18], %22 {strides = array<i32>} : memref<8x128xf32, #tpu.memory_space<vmem>>, vector<8x128xf32>,
    return
  }
  func.func @transform_0(%arg0: i32) -> (i32, i32) {
    %c0_i32 = arith.constant 0 : i32
    %c0_i32_0 = arith.constant 0 : i32
    return %arg0, %c0_i32 : i32, i32
  }
  func.func @transform_1(%arg0: i32) -> (i32, i32) {
    %c0_i32 = arith.constant 0 : i32
    %c0_i32_0 = arith.constant 0 : i32
    %c0_i32_1 = arith.constant 0 : i32
    return %c0_i32, %c0_i32_0 : i32, i32
  }
  func.func @transform_2(%arg0: i32) -> (i32, i32) {
    %c0_i32 = arith.constant 0 : i32
    %c0_i32_0 = arith.constant 0 : i32
    %c0_i32_1 = arith.constant 0 : i32
    return %c0_i32, %c0_i32_0 : i32, i32
  }
  func.func @transform_3(%arg0: i32) -> (i32, i32) {
    %c0_i32 = arith.constant 0 : i32
    %c0_i32_0 = arith.constant 0 : i32
    %c0_i32_1 = arith.constant 0 : i32
    return %c0_i32, %c0_i32_0 : i32, i32
  }
  func.func @transform_4(%arg0: i32) -> (i32, i32) {
    %c0_i32 = arith.constant 0 : i32
    %c0_i32_0 = arith.constant 0 : i32
    %c0_i32_1 = arith.constant 0 : i32
    return %c0_i32, %c0_i32_0 : i32, i32
  }
  func.func @transform_5(%arg0: i32) -> (i32, i32) {
    %c0_i32 = arith.constant 0 : i32
    %c0_i32_0 = arith.constant 0 : i32
    %c0_i32_1 = arith.constant 0 : i32
    return %c0_i32, %c0_i32_0 : i32, i32
  }
  func.func @transform_6(%arg0: i32) -> (i32, i32) {
    %c0_i32 = arith.constant 0 : i32
    %c0_i32_0 = arith.constant 0 : i32
    %c0_i32_1 = arith.constant 0 : i32
    return %c0_i32, %c0_i32_0 : i32, i32
  }
  func.func @transform_7(%arg0: i32) -> (i32, i32) {
    %c0_i32 = arith.constant 0 : i32
    %c0_i32_0 = arith.constant 0 : i32
    return %arg0, %c0_i32 : i32, i32
  }
}

</mosaic_0001>

<llo_original>
// kernel: dense2_forward.1
$region0: #{dense2_forward.1}
  #allocation0 [shape = 'u32[]', space=smem, size = 0x4, offset = 0x4, fixed_abs, tag = 'smem constant byte address 0x4 - core index']
  #allocation1 [shape = 'u32[144,128]{1,0:T(1,128)}', space=vmem, size = 0x12000, scoped, tag = 'internal scratch']
  %s0 = inlined_call_operand.vmem [shape: f32[8,784], index: 0, kind: input, shape index: {}]
  %s1 = inlined_call_operand.hbm [shape: bf16[784,256], index: 1, kind: input, shape index: {}]
  %s2 = inlined_call_operand.vmem [shape: f32[1,256], index: 2, kind: input, shape index: {}]
  %s3 = inlined_call_operand.vmem [shape: bf16[256,256], index: 3, kind: input, shape index: {}]
  %s4 = inlined_call_operand.vmem [shape: f32[1,256], index: 4, kind: input, shape index: {}]
  %s5 = inlined_call_operand.hbm [shape: bf16[256,128], index: 5, kind: input, shape index: {}]
  %s6 = inlined_call_operand.vmem [shape: f32[1,128], index: 6, kind: input, shape index: {}]
  %s7 = inlined_call_operand.vmem [shape: f32[8,128], index: 7, kind: output, shape index: {}]
  %s8 = sld [smem:[#allocation0]]
  $region46: #{dense2_forward.1} parent=0
    _
  %s10 = ssub.s32 1, %s8
  %s11 = scalar_select 0, %s10, %s8
  $region1: #{dense2_forward.1} parent=0
    #allocation2 [shape = 'u8[401408]{0}', space=vmem, size = 0x62000, scoped, tag = 'input window, operand 1, single buffered']
    #allocation3 [shape = 's32[1]{0}', space=sflag, size = 0x4, scoped, tag = 'scoped memory for dense2_forward.1']
    #allocation4 [shape = 'u8[65536]{0}', space=vmem, size = 0x10000, scoped, tag = 'input window, operand 5, single buffered']
    #allocation5 [shape = 's32[1]{0}', space=sflag, size = 0x4, scoped, tag = 'scoped memory for dense2_forward.1']
    %12 = vsyncpa [#allocation3], 0
    %13 = vsyncpa [#allocation5], 0
    // Predicated region
    $region2: #{dense2_forward.1} parent=1 // pred_check
      _
    $region3: #{dense2_forward.1} parent=1 // pred_check_branch
      %15 = sbr.rel (0) target = $region5
    $region4: #{dense2_forward.1} parent=1 // pred_region
      _
    $region5: #{dense2_forward.1} parent=1 // pred_fallthru
      _
    // Predicated region
    $region6: #{dense2_forward.1} parent=1 // pred_check
      _
    $region7: #{dense2_forward.1} parent=1 // pred_check_branch
      %17 = sbr.rel (0) target = $region9
    $region8: #{dense2_forward.1} parent=1 // pred_region
      %s19 = ssub.s32 12544, 12544
      %20 = vsyncadd [#allocation3], %s19
      %s21 = sshll.u32 [#allocation2], 4
      %s22 = int_to_ptr.vmem [resolvable:$true] %s21
      %27 = dma.hbm_to_vmem [thread:$0]  %s1, 12544, %s22, [#allocation3], 128, 128, 8
    $region9: #{dense2_forward.1} parent=1 // pred_fallthru
      _
    // Predicated region
    $region10: #{dense2_forward.1} parent=1 // pred_check
      _
    $region11: #{dense2_forward.1} parent=1 // pred_check_branch
      %29 = sbr.rel (0) target = $region13
    $region12: #{dense2_forward.1} parent=1 // pred_region
      _
    $region13: #{dense2_forward.1} parent=1 // pred_fallthru
      _
    // Predicated region
    $region14: #{dense2_forward.1} parent=1 // pred_check
      _
    $region15: #{dense2_forward.1} parent=1 // pred_check_branch
      %31 = sbr.rel (0) target = $region17
    $region16: #{dense2_forward.1} parent=1 // pred_region
      _
    $region17: #{dense2_forward.1} parent=1 // pred_fallthru
      _
    // Predicated region
    $region18: #{dense2_forward.1} parent=1 // pred_check
      _
    $region19: #{dense2_forward.1} parent=1 // pred_check_branch
      %33 = sbr.rel (0) target = $region21
    $region20: #{dense2_forward.1} parent=1 // pred_region
      _
    $region21: #{dense2_forward.1} parent=1 // pred_fallthru
      _
    // Predicated region
    $region22: #{dense2_forward.1} parent=1 // pred_check
      _
    $region23: #{dense2_forward.1} parent=1 // pred_check_branch
      %35 = sbr.rel (0) target = $region25
    $region24: #{dense2_forward.1} parent=1 // pred_region
      %s37 = ssub.s32 2048, 2048
      %38 = vsyncadd [#allocation5], %s37
      %s39 = sshll.u32 [#allocation4], 4
      %s40 = int_to_ptr.vmem [resolvable:$true] %s39
      %45 = dma.hbm_to_vmem [thread:$0]  %s5, 2048, %s40, [#allocation5], 64, 64, 4
    $region25: #{dense2_forward.1} parent=1 // pred_fallthru
      _
    // Predicated region
    $region26: #{dense2_forward.1} parent=1 // pred_check
      _
    $region27: #{dense2_forward.1} parent=1 // pred_check_branch
      %47 = sbr.rel (0) target = $region29
    $region28: #{dense2_forward.1} parent=1 // pred_region
      _
    $region29: #{dense2_forward.1} parent=1 // pred_fallthru
      _
    // Predicated region
    $region30: #{dense2_forward.1} parent=1 // pred_check
      _
    $region31: #{dense2_forward.1} parent=1 // pred_check_branch
      %49 = sbr.rel (0) target = $region33
    $region32: #{dense2_forward.1} parent=1 // pred_region
      %50 = dma.done [#allocation3], 12544
    $region33: #{dense2_forward.1} parent=1 // pred_fallthru
      _
    // Predicated region
    $region34: #{dense2_forward.1} parent=1 // pred_check
      _
    $region35: #{dense2_forward.1} parent=1 // pred_check_branch
      %52 = sbr.rel (0) target = $region37
    $region36: #{dense2_forward.1} parent=1 // pred_region
      %53 = dma.done [#allocation5], 2048
    $region37: #{dense2_forward.1} parent=1 // pred_fallthru
      _
    %v55 = vld [vmem:[%s0] sm:$0xff]
    %v56 = vld [vmem:[%s0 + $0x8] sm:$0xff]
    %v57 = vld [vmem:[%s0 + $0x10] sm:$0xff]
    %v58 = vld [vmem:[%s0 + $0x18] sm:$0xff]
    %v59 = vld [vmem:[%s0 + $0x20] sm:$0xff]
    %v60 = vld [vmem:[%s0 + $0x28] sm:$0xff]
    %v61 = vld [vmem:[%s0 + $0x30] sm:$0xff]
    %v62 = vpack.c.bf16 %v55, %v55
    %v63 = vpack.c.bf16 %v56, %v56
    %v64 = vpack.c.bf16 %v57, %v57
    %v65 = vpack.c.bf16 %v58, %v58
    %v66 = vpack.c.bf16 %v59, %v59
    %v67 = vpack.c.bf16 %v60, %v60
    %v68 = vpack.c.bf16 %v61, %v61
    %v69 = vld [vmem:[#allocation2] sm:$0xff]
    %v70 = vld [vmem:[#allocation2 + $0x8] sm:$0xff]
    %v71 = vld [vmem:[#allocation2 + $0x10] sm:$0xff]
    %v72 = vld [vmem:[#allocation2 + $0x18] sm:$0xff]
    %v73 = vld [vmem:[#allocation2 + $0x20] sm:$0xff]
    %v74 = vld [vmem:[#allocation2 + $0x28] sm:$0xff]
    %v75 = vld [vmem:[#allocation2 + $0x30] sm:$0xff]
    %v76 = vld [vmem:[#allocation2 + $0x38] sm:$0xff]
    %v77 = vld [vmem:[#allocation2 + $0x40] sm:$0xff]
    %v78 = vld [vmem:[#allocation2 + $0x48] sm:$0xff]
    %v79 = vld [vmem:[#allocation2 + $0x50] sm:$0xff]
    %v80 = vld [vmem:[#allocation2 + $0x58] sm:$0xff]
    %v81 = vld [vmem:[#allocation2 + $0x60] sm:$0xff]
    %v82 = vld [vmem:[#allocation2 + $0x68] sm:$0xff]
    %v83 = vld [vmem:[#allocation2 + $0x70] sm:$0xff]
    %v84 = vld [vmem:[#allocation2 + $0x78] sm:$0xff]
    %v85 = vld [vmem:[#allocation2 + $0x80] sm:$0xff]
    %v86 = vld [vmem:[#allocation2 + $0x88] sm:$0xff]
    %v87 = vld [vmem:[#allocation2 + $0x90] sm:$0xff]
    %v88 = vld [vmem:[#allocation2 + $0x98] sm:$0xff]
    %v89 = vld [vmem:[#allocation2 + $0xa0] sm:$0xff]
    %v90 = vld [vmem:[#allocation2 + $0xa8] sm:$0xff]
    %v91 = vld [vmem:[#allocation2 + $0xb0] sm:$0xff]
    %v92 = vld [vmem:[#allocation2 + $0xb8] sm:$0xff]
    %v93 = vld [vmem:[#allocation2 + $0xc0] sm:$0xff]
    %v94 = vld [vmem:[#allocation2 + $0xc8] sm:$0xff]
    %v95 = vld [vmem:[#allocation2 + $0xd0] sm:$0xff]
    %v96 = vld [vmem:[#allocation2 + $0xd8] sm:$0xff]
    %v97 = vld [vmem:[#allocation2 + $0xe0] sm:$0xff]
    %v98 = vld [vmem:[#allocation2 + $0xe8] sm:$0xff]
    %v99 = vld [vmem:[#allocation2 + $0xf0] sm:$0xff]
    %v100 = vld [vmem:[#allocation2 + $0xf8] sm:$0xff]
    %v101 = vld [vmem:[#allocation2 + $0x100] sm:$0xff]
    %v102 = vld [vmem:[#allocation2 + $0x108] sm:$0xff]
    %v103 = vld [vmem:[#allocation2 + $0x110] sm:$0xff]
    %v104 = vld [vmem:[#allocation2 + $0x118] sm:$0xff]
    %v105 = vld [vmem:[#allocation2 + $0x120] sm:$0xff]
    %v106 = vld [vmem:[#allocation2 + $0x128] sm:$0xff]
    %v107 = vld [vmem:[#allocation2 + $0x130] sm:$0xff]
    %v108 = vld [vmem:[#allocation2 + $0x138] sm:$0xff]
    %v109 = vld [vmem:[#allocation2 + $0x140] sm:$0xff]
    %v110 = vld [vmem:[#allocation2 + $0x148] sm:$0xff]
    %v111 = vld [vmem:[#allocation2 + $0x150] sm:$0xff]
    %v112 = vld [vmem:[#allocation2 + $0x158] sm:$0xff]
    %v113 = vld [vmem:[#allocation2 + $0x160] sm:$0xff]
    %v114 = vld [vmem:[#allocation2 + $0x168] sm:$0xff]
    %v115 = vld [vmem:[#allocation2 + $0x170] sm:$0xff]
    %v116 = vld [vmem:[#allocation2 + $0x178] sm:$0xff]
    %v117 = vld [vmem:[#allocation2 + $0x180] sm:$0xff]
    %v118 = vld [vmem:[#allocation2 + $0x188] sm:$0xff]
    %v119 = vld [vmem:[#allocation2 + $0x190] sm:$0xff]
    %v120 = vld [vmem:[#allocation2 + $0x198] sm:$0xff]
    %v121 = vld [vmem:[#allocation2 + $0x1a0] sm:$0xff]
    %v122 = vld [vmem:[#allocation2 + $0x1a8] sm:$0xff]
    %v123 = vld [vmem:[#allocation2 + $0x1b0] sm:$0xff]
    %v124 = vld [vmem:[#allocation2 + $0x1b8] sm:$0xff]
    %v125 = vld [vmem:[#allocation2 + $0x1c0] sm:$0xff]
    %v126 = vld [vmem:[#allocation2 + $0x1c8] sm:$0xff]
    %v127 = vld [vmem:[#allocation2 + $0x1d0] sm:$0xff]
    %v128 = vld [vmem:[#allocation2 + $0x1d8] sm:$0xff]
    %v129 = vld [vmem:[#allocation2 + $0x1e0] sm:$0xff]
    %v130 = vld [vmem:[#allocation2 + $0x1e8] sm:$0xff]
    %v131 = vld [vmem:[#allocation2 + $0x1f0] sm:$0xff]
    %v132 = vld [vmem:[#allocation2 + $0x1f8] sm:$0xff]
    %v133 = vld [vmem:[#allocation2 + $0x200] sm:$0xff]
    %v134 = vld [vmem:[#allocation2 + $0x208] sm:$0xff]
    %v135 = vld [vmem:[#allocation2 + $0x210] sm:$0xff]
    %v136 = vld [vmem:[#allocation2 + $0x218] sm:$0xff]
    %v137 = vld [vmem:[#allocation2 + $0x220] sm:$0xff]
    %v138 = vld [vmem:[#allocation2 + $0x228] sm:$0xff]
    %v139 = vld [vmem:[#allocation2 + $0x230] sm:$0xff]
    %v140 = vld [vmem:[#allocation2 + $0x238] sm:$0xff]
    %v141 = vld [vmem:[#allocation2 + $0x240] sm:$0xff]
    %v142 = vld [vmem:[#allocation2 + $0x248] sm:$0xff]
    %v143 = vld [vmem:[#allocation2 + $0x250] sm:$0xff]
    %v144 = vld [vmem:[#allocation2 + $0x258] sm:$0xff]
    %v145 = vld [vmem:[#allocation2 + $0x260] sm:$0xff]
    %v146 = vld [vmem:[#allocation2 + $0x268] sm:$0xff]
    %v147 = vld [vmem:[#allocation2 + $0x270] sm:$0xff]
    %v148 = vld [vmem:[#allocation2 + $0x278] sm:$0xff]
    %v149 = vld [vmem:[#allocation2 + $0x280] sm:$0xff]
    %v150 = vld [vmem:[#allocation2 + $0x288] sm:$0xff]
    %v151 = vld [vmem:[#allocation2 + $0x290] sm:$0xff]
    %v152 = vld [vmem:[#allocation2 + $0x298] sm:$0xff]
    %v153 = vld [vmem:[#allocation2 + $0x2a0] sm:$0xff]
    %v154 = vld [vmem:[#allocation2 + $0x2a8] sm:$0xff]
    %v155 = vld [vmem:[#allocation2 + $0x2b0] sm:$0xff]
    %v156 = vld [vmem:[#allocation2 + $0x2b8] sm:$0xff]
    %v157 = vld [vmem:[#allocation2 + $0x2c0] sm:$0xff]
    %v158 = vld [vmem:[#allocation2 + $0x2c8] sm:$0xff]
    %v159 = vld [vmem:[#allocation2 + $0x2d0] sm:$0xff]
    %v160 = vld [vmem:[#allocation2 + $0x2d8] sm:$0xff]
    %v161 = vld [vmem:[#allocation2 + $0x2e0] sm:$0xff]
    %v162 = vld [vmem:[#allocation2 + $0x2e8] sm:$0xff]
    %v163 = vld [vmem:[#allocation2 + $0x2f0] sm:$0xff]
    %v164 = vld [vmem:[#allocation2 + $0x2f8] sm:$0xff]
    %v165 = vld [vmem:[#allocation2 + $0x300] sm:$0xff]
    %v166 = vld [vmem:[#allocation2 + $0x308] sm:$0xff]
    %v167 = vld [vmem:[%s2] sm:$0x3]
    %v169 = vlaneseq
    %v170 = vshrl.u32 %v169, 7
    %v171 = vsub.s32 0, %v170
    %v172 = vrot.slane %v167, %v171
    %v173 = vlaneseq
    %v174 = vshrl.u32 %v173, 7
    %v175 = vsub.s32 1, %v174
    %v176 = vrot.slane %v167, %v175
    %v277 = vunpack.c.l.b16 %v69
    %v278 = vunpack.c.h.b16 %v69
    %v279 = vunpack.c.l.b16 %v70
    %v280 = vunpack.c.h.b16 %v70
    %v281 = vunpack.c.l.b16 %v71
    %v282 = vunpack.c.h.b16 %v71
    %v283 = vunpack.c.l.b16 %v72
    %v284 = vunpack.c.h.b16 %v72
    %v285 = vunpack.c.l.b16 %v73
    %v286 = vunpack.c.h.b16 %v73
    %v287 = vunpack.c.l.b16 %v74
    %v288 = vunpack.c.h.b16 %v74
    %v289 = vunpack.c.l.b16 %v75
    %v290 = vunpack.c.h.b16 %v75
    %v291 = vunpack.c.l.b16 %v76
    %v292 = vunpack.c.h.b16 %v76
    %v293 = vunpack.c.l.b16 %v77
    %v294 = vunpack.c.h.b16 %v77
    %v295 = vunpack.c.l.b16 %v78
    %v296 = vunpack.c.h.b16 %v78
    %v297 = vunpack.c.l.b16 %v79
    %v298 = vunpack.c.h.b16 %v79
    %v299 = vunpack.c.l.b16 %v80
    %v300 = vunpack.c.h.b16 %v80
    %v301 = vunpack.c.l.b16 %v81
    %v302 = vunpack.c.h.b16 %v81
    %v303 = vunpack.c.l.b16 %v82
    %v304 = vunpack.c.h.b16 %v82
    %v305 = vunpack.c.l.b16 %v83
    %v306 = vunpack.c.h.b16 %v83
    %v307 = vunpack.c.l.b16 %v84
    %v308 = vunpack.c.h.b16 %v84
    %v309 = vunpack.c.l.b16 %v85
    %v310 = vunpack.c.h.b16 %v85
    %v311 = vunpack.c.l.b16 %v86
    %v312 = vunpack.c.h.b16 %v86
    %v313 = vunpack.c.l.b16 %v87
    %v314 = vunpack.c.h.b16 %v87
    %v315 = vunpack.c.l.b16 %v88
    %v316 = vunpack.c.h.b16 %v88
    %v317 = vunpack.c.l.b16 %v89
    %v318 = vunpack.c.h.b16 %v89
    %v319 = vunpack.c.l.b16 %v90
    %v320 = vunpack.c.h.b16 %v90
    %v321 = vunpack.c.l.b16 %v91
    %v322 = vunpack.c.h.b16 %v91
    %v323 = vunpack.c.l.b16 %v92
    %v324 = vunpack.c.h.b16 %v92
    %v325 = vunpack.c.l.b16 %v93
    %v326 = vunpack.c.h.b16 %v93
    %v327 = vunpack.c.l.b16 %v94
    %v328 = vunpack.c.h.b16 %v94
    %v329 = vunpack.c.l.b16 %v95
    %v330 = vunpack.c.h.b16 %v95
    %v331 = vunpack.c.l.b16 %v96
    %v332 = vunpack.c.h.b16 %v96
    %v333 = vunpack.c.l.b16 %v97
    %v334 = vunpack.c.h.b16 %v97
    %v335 = vunpack.c.l.b16 %v98
    %v336 = vunpack.c.h.b16 %v98
    %v337 = vunpack.c.l.b16 %v99
    %v338 = vunpack.c.h.b16 %v99
    %v339 = vunpack.c.l.b16 %v100
    %v340 = vunpack.c.h.b16 %v100
    %v341 = vunpack.c.l.b16 %v101
    %v342 = vunpack.c.h.b16 %v101
    %v343 = vunpack.c.l.b16 %v102
    %v344 = vunpack.c.h.b16 %v102
    %v345 = vunpack.c.l.b16 %v103
    %v346 = vunpack.c.h.b16 %v103
    %v347 = vunpack.c.l.b16 %v104
    %v348 = vunpack.c.h.b16 %v104
    %v349 = vunpack.c.l.b16 %v105
    %v350 = vunpack.c.h.b16 %v105
    %v351 = vunpack.c.l.b16 %v106
    %v352 = vunpack.c.h.b16 %v106
    %v353 = vunpack.c.l.b16 %v107
    %v354 = vunpack.c.h.b16 %v107
    %v355 = vunpack.c.l.b16 %v108
    %v356 = vunpack.c.h.b16 %v108
    %v357 = vunpack.c.l.b16 %v109
    %v358 = vunpack.c.h.b16 %v109
    %v359 = vunpack.c.l.b16 %v110
    %v360 = vunpack.c.h.b16 %v110
    %v361 = vunpack.c.l.b16 %v111
    %v362 = vunpack.c.h.b16 %v111
    %v363 = vunpack.c.l.b16 %v112
    %v364 = vunpack.c.h.b16 %v112
    %v365 = vunpack.c.l.b16 %v113
    %v366 = vunpack.c.h.b16 %v113
    %v367 = vunpack.c.l.b16 %v114
    %v368 = vunpack.c.h.b16 %v114
    %v369 = vunpack.c.l.b16 %v115
    %v370 = vunpack.c.h.b16 %v115
    %v371 = vunpack.c.l.b16 %v116
    %v372 = vunpack.c.h.b16 %v116
    %v373 = vunpack.c.l.b16 %v117
    %v374 = vunpack.c.h.b16 %v117
    %v375 = vunpack.c.l.b16 %v118
    %v376 = vunpack.c.h.b16 %v118
    %v377 = vunpack.c.l.b16 %v119
    %v378 = vunpack.c.h.b16 %v119
    %v379 = vunpack.c.l.b16 %v120
    %v380 = vunpack.c.h.b16 %v120
    %v381 = vunpack.c.l.b16 %v121
    %v382 = vunpack.c.h.b16 %v121
    %v383 = vunpack.c.l.b16 %v122
    %v384 = vunpack.c.h.b16 %v122
    %v385 = vunpack.c.l.b16 %v123
    %v386 = vunpack.c.h.b16 %v123
    %v387 = vunpack.c.l.b16 %v124
    %v388 = vunpack.c.h.b16 %v124
    %v389 = vunpack.c.l.b16 %v125
    %v390 = vunpack.c.h.b16 %v125
    %v391 = vunpack.c.l.b16 %v126
    %v392 = vunpack.c.h.b16 %v126
    %v393 = vunpack.c.l.b16 %v127
    %v394 = vunpack.c.h.b16 %v127
    %v395 = vunpack.c.l.b16 %v128
    %v396 = vunpack.c.h.b16 %v128
    %v397 = vunpack.c.l.b16 %v129
    %v398 = vunpack.c.h.b16 %v129
    %v399 = vunpack.c.l.b16 %v130
    %v400 = vunpack.c.h.b16 %v130
    %v401 = vunpack.c.l.b16 %v131
    %v402 = vunpack.c.h.b16 %v131
    %v403 = vunpack.c.l.b16 %v132
    %v404 = vunpack.c.h.b16 %v132
    %v405 = vunpack.c.l.b16 %v133
    %v406 = vunpack.c.h.b16 %v133
    %v407 = vunpack.c.l.b16 %v134
    %v408 = vunpack.c.h.b16 %v134
    %v409 = vunpack.c.l.b16 %v135
    %v410 = vunpack.c.h.b16 %v135
    %v411 = vunpack.c.l.b16 %v136
    %v412 = vunpack.c.h.b16 %v136
    %v413 = vunpack.c.l.b16 %v137
    %v414 = vunpack.c.h.b16 %v137
    %v415 = vunpack.c.l.b16 %v138
    %v416 = vunpack.c.h.b16 %v138
    %v417 = vunpack.c.l.b16 %v139
    %v418 = vunpack.c.h.b16 %v139
    %v419 = vunpack.c.l.b16 %v140
    %v420 = vunpack.c.h.b16 %v140
    %v421 = vunpack.c.l.b16 %v141
    %v422 = vunpack.c.h.b16 %v141
    %v423 = vunpack.c.l.b16 %v142
    %v424 = vunpack.c.h.b16 %v142
    %v425 = vunpack.c.l.b16 %v143
    %v426 = vunpack.c.h.b16 %v143
    %v427 = vunpack.c.l.b16 %v144
    %v428 = vunpack.c.h.b16 %v144
    %v429 = vunpack.c.l.b16 %v145
    %v430 = vunpack.c.h.b16 %v145
    %v431 = vunpack.c.l.b16 %v146
    %v432 = vunpack.c.h.b16 %v146
    %v433 = vunpack.c.l.b16 %v147
    %v434 = vunpack.c.h.b16 %v147
    %v435 = vunpack.c.l.b16 %v148
    %v436 = vunpack.c.h.b16 %v148
    %v437 = vunpack.c.l.b16 %v149
    %v438 = vunpack.c.h.b16 %v149
    %v439 = vunpack.c.l.b16 %v150
    %v440 = vunpack.c.h.b16 %v150
    %v441 = vunpack.c.l.b16 %v151
    %v442 = vunpack.c.h.b16 %v151
    %v443 = vunpack.c.l.b16 %v152
    %v444 = vunpack.c.h.b16 %v152
    %v445 = vunpack.c.l.b16 %v153
    %v446 = vunpack.c.h.b16 %v153
    %v447 = vunpack.c.l.b16 %v154
    %v448 = vunpack.c.h.b16 %v154
    %v449 = vunpack.c.l.b16 %v155
    %v450 = vunpack.c.h.b16 %v155
    %v451 = vunpack.c.l.b16 %v156
    %v452 = vunpack.c.h.b16 %v156
    %v453 = vunpack.c.l.b16 %v157
    %v454 = vunpack.c.h.b16 %v157
    %v455 = vunpack.c.l.b16 %v158
    %v456 = vunpack.c.h.b16 %v158
    %v457 = vunpack.c.l.b16 %v159
    %v458 = vunpack.c.h.b16 %v159
    %v459 = vunpack.c.l.b16 %v160
    %v460 = vunpack.c.h.b16 %v160
    %v461 = vunpack.c.l.b16 %v161
    %v462 = vunpack.c.h.b16 %v161
    %v463 = vunpack.c.l.b16 %v162
    %v464 = vunpack.c.h.b16 %v162
    %v465 = vunpack.c.l.b16 %v163
    %v466 = vunpack.c.h.b16 %v163
    %v467 = vunpack.c.l.b16 %v164
    %v468 = vunpack.c.h.b16 %v164
    %v469 = vunpack.c.l.b16 %v165
    %v470 = vunpack.c.h.b16 %v165
    %v471 = vunpack.c.l.b16 %v166
    %v472 = vunpack.c.h.b16 %v166
    %v473 = vpack.c.b16 %v279, %v277
    %v474 = vpack.c.b16 %v280, %v278
    %v475 = vpack.c.b16 %v283, %v281
    %v476 = vpack.c.b16 %v284, %v282
    %v477 = vpack.c.b16 %v287, %v285
    %v478 = vpack.c.b16 %v288, %v286
    %v479 = vpack.c.b16 %v291, %v289
    %v480 = vpack.c.b16 %v292, %v290
    %v481 = vpack.c.b16 %v295, %v293
    %v482 = vpack.c.b16 %v296, %v294
    %v483 = vpack.c.b16 %v299, %v297
    %v484 = vpack.c.b16 %v300, %v298
    %v485 = vpack.c.b16 %v303, %v301
    %v486 = vpack.c.b16 %v304, %v302
    %v487 = vpack.c.b16 %v307, %v305
    %v488 = vpack.c.b16 %v308, %v306
    %v489 = vpack.c.b16 %v311, %v309
    %v490 = vpack.c.b16 %v312, %v310
    %v491 = vpack.c.b16 %v315, %v313
    %v492 = vpack.c.b16 %v316, %v314
    %v493 = vpack.c.b16 %v319, %v317
    %v494 = vpack.c.b16 %v320, %v318
    %v495 = vpack.c.b16 %v323, %v321
    %v496 = vpack.c.b16 %v324, %v322
    %v497 = vpack.c.b16 %v327, %v325
    %v498 = vpack.c.b16 %v328, %v326
    %v499 = vpack.c.b16 %v331, %v329
    %v500 = vpack.c.b16 %v332, %v330
    %v501 = vpack.c.b16 %v335, %v333
    %v502 = vpack.c.b16 %v336, %v334
    %v503 = vpack.c.b16 %v339, %v337
    %v504 = vpack.c.b16 %v340, %v338
    %v505 = vpack.c.b16 %v343, %v341
    %v506 = vpack.c.b16 %v344, %v342
    %v507 = vpack.c.b16 %v347, %v345
    %v508 = vpack.c.b16 %v348, %v346
    %v509 = vpack.c.b16 %v351, %v349
    %v510 = vpack.c.b16 %v352, %v350
    %v511 = vpack.c.b16 %v355, %v353
    %v512 = vpack.c.b16 %v356, %v354
    %v513 = vpack.c.b16 %v359, %v357
    %v514 = vpack.c.b16 %v360, %v358
    %v515 = vpack.c.b16 %v363, %v361
    %v516 = vpack.c.b16 %v364, %v362
    %v517 = vpack.c.b16 %v367, %v365
    %v518 = vpack.c.b16 %v368, %v366
    %v519 = vpack.c.b16 %v371, %v369
    %v520 = vpack.c.b16 %v372, %v370
    %v521 = vpack.c.b16 %v375, %v373
    %v522 = vpack.c.b16 %v376, %v374
    %v523 = vpack.c.b16 %v379, %v377
    %v524 = vpack.c.b16 %v380, %v378
    %v525 = vpack.c.b16 %v383, %v381
    %v526 = vpack.c.b16 %v384, %v382
    %v527 = vpack.c.b16 %v387, %v385
    %v528 = vpack.c.b16 %v388, %v386
    %v529 = vpack.c.b16 %v391, %v389
    %v530 = vpack.c.b16 %v392, %v390
    %v531 = vpack.c.b16 %v395, %v393
    %v532 = vpack.c.b16 %v396, %v394
    %v533 = vpack.c.b16 %v399, %v397
    %v534 = vpack.c.b16 %v400, %v398
    %v535 = vpack.c.b16 %v403, %v401
    %v536 = vpack.c.b16 %v404, %v402
    %v537 = vpack.c.b16 %v407, %v405
    %v538 = vpack.c.b16 %v408, %v406
    %v539 = vpack.c.b16 %v411, %v409
    %v540 = vpack.c.b16 %v412, %v410
    %v541 = vpack.c.b16 %v415, %v413
    %v542 = vpack.c.b16 %v416, %v414
    %v543 = vpack.c.b16 %v419, %v417
    %v544 = vpack.c.b16 %v420, %v418
    %v545 = vpack.c.b16 %v423, %v421
    %v546 = vpack.c.b16 %v424, %v422
    %v547 = vpack.c.b16 %v427, %v425
    %v548 = vpack.c.b16 %v428, %v426
    %v549 = vpack.c.b16 %v431, %v429
    %v550 = vpack.c.b16 %v432, %v430
    %v551 = vpack.c.b16 %v435, %v433
    %v552 = vpack.c.b16 %v436, %v434
    %v553 = vpack.c.b16 %v439, %v437
    %v554 = vpack.c.b16 %v440, %v438
    %v555 = vpack.c.b16 %v443, %v441
    %v556 = vpack.c.b16 %v444, %v442
    %v557 = vpack.c.b16 %v447, %v445
    %v558 = vpack.c.b16 %v448, %v446
    %v559 = vpack.c.b16 %v451, %v449
    %v560 = vpack.c.b16 %v452, %v450
    %v561 = vpack.c.b16 %v455, %v453
    %v562 = vpack.c.b16 %v456, %v454
    %v563 = vpack.c.b16 %v459, %v457
    %v564 = vpack.c.b16 %v460, %v458
    %v565 = vpack.c.b16 %v463, %v461
    %v566 = vpack.c.b16 %v464, %v462
    %v567 = vpack.c.b16 %v467, %v465
    %v568 = vpack.c.b16 %v468, %v466
    %v569 = vpack.c.b16 %v471, %v469
    %v570 = vpack.c.b16 %v472, %v470
    %vm669 = vcmask 130048
    %v671 = vsel %vm669, %v68, 0
    %673 = vmatprep.subr.bf16.mxu0 %v474
    %674 = vmatpush1.bf16.msra.mxu0 %v473
    %675 = vmatprep.subr.bf16.mxu0 %v476
    %676 = vmatpush1.bf16.msra.mxu0 %v475
    %677 = vmatprep.subr.bf16.mxu0 %v478
    %678 = vmatpush1.bf16.msra.mxu0 %v477
    %679 = vmatprep.subr.bf16.mxu0 %v480
    %680 = vmatpush1.bf16.msra.mxu0 %v479
    %681 = vmatprep.subr.bf16.mxu0 %v482
    %682 = vmatpush1.bf16.msra.mxu0 %v481
    %683 = vmatprep.subr.bf16.mxu0 %v484
    %684 = vmatpush1.bf16.msra.mxu0 %v483
    %685 = vmatprep.subr.bf16.mxu0 %v486
    %686 = vmatpush1.bf16.msra.mxu0 %v485
    %687 = vmatprep.subr.bf16.mxu0 %v488
    %688 = vmatpush1.bf16.msra.mxu0 %v487
    %689 = vmatprep.subr.bf16.mxu0 %v490
    %690 = vmatpush1.bf16.msra.mxu0 %v489
    %691 = vmatprep.subr.bf16.mxu0 %v492
    %692 = vmatpush1.bf16.msra.mxu0 %v491
    %693 = vmatprep.subr.bf16.mxu0 %v494
    %694 = vmatpush1.bf16.msra.mxu0 %v493
    %695 = vmatprep.subr.bf16.mxu0 %v496
    %696 = vmatpush1.bf16.msra.mxu0 %v495
    %697 = vmatprep.subr.bf16.mxu0 %v498
    %698 = vmatpush1.bf16.msra.mxu0 %v497
    %699 = vmatprep.subr.bf16.mxu0 %v500
    %700 = vmatpush1.bf16.msra.mxu0 %v499
    %701 = vmatprep.subr.bf16.mxu0 %v502
    %702 = vmatpush1.bf16.msra.mxu0 %v501
    %703 = vmatprep.subr.bf16.mxu0 %v504
    %704 = vmatpush1.bf16.msra.mxu0 %v503
    %705 = vmatprep.mubr.bf16.mxu0 %v63
    %706 = vmatmul.mubr.bf16.gmra.mrb[0].mxu0 %v62
    %v707 = vpop.f32.mrb[0].mxu0
    %v708 = vadd.f32 %v172, %v707
    %v709 = vpop.f32.mrb[0].mxu0
    %v710 = vadd.f32 %v176, %v709
    %v711 = vpop.f32.mrb[0].mxu0
    %v712 = vpop.f32.mrb[0].mxu0
    %713 = vdwg.mxu0
    %714 = vmatprep.subr.bf16.mxu0 %v506
    %715 = vmatpush1.bf16.msra.mxu0 %v505
    %716 = vmatprep.subr.bf16.mxu0 %v508
    %717 = vmatpush1.bf16.msra.mxu0 %v507
    %718 = vmatprep.subr.bf16.mxu0 %v510
    %719 = vmatpush1.bf16.msra.mxu0 %v509
    %720 = vmatprep.subr.bf16.mxu0 %v512
    %721 = vmatpush1.bf16.msra.mxu0 %v511
    %722 = vmatprep.subr.bf16.mxu0 %v514
    %723 = vmatpush1.bf16.msra.mxu0 %v513
    %724 = vmatprep.subr.bf16.mxu0 %v516
    %725 = vmatpush1.bf16.msra.mxu0 %v515
    %726 = vmatprep.subr.bf16.mxu0 %v518
    %727 = vmatpush1.bf16.msra.mxu0 %v517
    %728 = vmatprep.subr.bf16.mxu0 %v520
    %729 = vmatpush1.bf16.msra.mxu0 %v519
    %730 = vmatprep.subr.bf16.mxu0 %v522
    %731 = vmatpush1.bf16.msra.mxu0 %v521
    %732 = vmatprep.subr.bf16.mxu0 %v524
    %733 = vmatpush1.bf16.msra.mxu0 %v523
    %734 = vmatprep.subr.bf16.mxu0 %v526
    %735 = vmatpush1.bf16.msra.mxu0 %v525
    %736 = vmatprep.subr.bf16.mxu0 %v528
    %737 = vmatpush1.bf16.msra.mxu0 %v527
    %738 = vmatprep.subr.bf16.mxu0 %v530
    %739 = vmatpush1.bf16.msra.mxu0 %v529
    %740 = vmatprep.subr.bf16.mxu0 %v532
    %741 = vmatpush1.bf16.msra.mxu0 %v531
    %742 = vmatprep.subr.bf16.mxu0 %v534
    %743 = vmatpush1.bf16.msra.mxu0 %v533
    %744 = vmatprep.subr.bf16.mxu0 %v536
    %745 = vmatpush1.bf16.msra.mxu0 %v535
    %746 = vmatprep.mubr.bf16.mxu0 %v65
    %747 = vmatmul.mubr.bf16.gmra.mrb[0].mxu0 %v64
    %v748 = vpop.f32.mrb[0].mxu0
    %v749 = vadd.f32 %v708, %v748
    %v750 = vpop.f32.mrb[0].mxu0
    %v751 = vadd.f32 %v710, %v750
    %v752 = vpop.f32.mrb[0].mxu0
    %v753 = vpop.f32.mrb[0].mxu0
    %754 = vdwg.mxu0
    %755 = vmatprep.subr.bf16.mxu0 %v538
    %756 = vmatpush1.bf16.msra.mxu0 %v537
    %757 = vmatprep.subr.bf16.mxu0 %v540
    %758 = vmatpush1.bf16.msra.mxu0 %v539
    %759 = vmatprep.subr.bf16.mxu0 %v542
    %760 = vmatpush1.bf16.msra.mxu0 %v541
    %761 = vmatprep.subr.bf16.mxu0 %v544
    %762 = vmatpush1.bf16.msra.mxu0 %v543
    %763 = vmatprep.subr.bf16.mxu0 %v546
    %764 = vmatpush1.bf16.msra.mxu0 %v545
    %765 = vmatprep.subr.bf16.mxu0 %v548
    %766 = vmatpush1.bf16.msra.mxu0 %v547
    %767 = vmatprep.subr.bf16.mxu0 %v550
    %768 = vmatpush1.bf16.msra.mxu0 %v549
    %769 = vmatprep.subr.bf16.mxu0 %v552
    %770 = vmatpush1.bf16.msra.mxu0 %v551
    %771 = vmatprep.subr.bf16.mxu0 %v554
    %772 = vmatpush1.bf16.msra.mxu0 %v553
    %773 = vmatprep.subr.bf16.mxu0 %v556
    %774 = vmatpush1.bf16.msra.mxu0 %v555
    %775 = vmatprep.subr.bf16.mxu0 %v558
    %776 = vmatpush1.bf16.msra.mxu0 %v557
    %777 = vmatprep.subr.bf16.mxu0 %v560
    %778 = vmatpush1.bf16.msra.mxu0 %v559
    %779 = vmatprep.subr.bf16.mxu0 %v562
    %780 = vmatpush1.bf16.msra.mxu0 %v561
    %781 = vmatprep.subr.bf16.mxu0 %v564
    %782 = vmatpush1.bf16.msra.mxu0 %v563
    %783 = vmatprep.subr.bf16.mxu0 %v566
    %784 = vmatpush1.bf16.msra.mxu0 %v565
    %785 = vmatprep.subr.bf16.mxu0 %v568
    %786 = vmatpush1.bf16.msra.mxu0 %v567
    %787 = vmatprep.mubr.bf16.mxu0 %v67
    %788 = vmatmul.mubr.bf16.gmra.mrb[0].mxu0 %v66
    %v789 = vpop.f32.mrb[0].mxu0
    %v790 = vadd.f32 %v749, %v789
    %v791 = vpop.f32.mrb[0].mxu0
    %v792 = vadd.f32 %v751, %v791
    %v793 = vpop.f32.mrb[0].mxu0
    %v794 = vpop.f32.mrb[0].mxu0
    %795 = vdwg.mxu0
    %796 = vmatprep.subr.bf16.mxu0 %v570
    %797 = vmatpush1.bf16.msra.mxu0 %v569
    %798 = vmatprep.subr.bf16.mxu0 0
    %799 = vmatpush1.bf16.msra.mxu0 0
    %800 = vmatprep.subr.bf16.mxu0 0
    %801 = vmatpush1.bf16.msra.mxu0 0
    %802 = vmatprep.subr.bf16.mxu0 0
    %803 = vmatpush1.bf16.msra.mxu0 0
    %804 = vmatprep.subr.bf16.mxu0 0
    %805 = vmatpush1.bf16.msra.mxu0 0
    %806 = vmatprep.subr.bf16.mxu0 0
    %807 = vmatpush1.bf16.msra.mxu0 0
    %808 = vmatprep.subr.bf16.mxu0 0
    %809 = vmatpush1.bf16.msra.mxu0 0
    %810 = vmatprep.subr.bf16.mxu0 0
    %811 = vmatpush1.bf16.msra.mxu0 0
    %812 = vmatprep.subr.bf16.mxu0 0
    %813 = vmatpush1.bf16.msra.mxu0 0
    %814 = vmatprep.subr.bf16.mxu0 0
    %815 = vmatpush1.bf16.msra.mxu0 0
    %816 = vmatprep.subr.bf16.mxu0 0
    %817 = vmatpush1.bf16.msra.mxu0 0
    %818 = vmatprep.subr.bf16.mxu0 0
    %819 = vmatpush1.bf16.msra.mxu0 0
    %820 = vmatprep.subr.bf16.mxu0 0
    %821 = vmatpush1.bf16.msra.mxu0 0
    %822 = vmatprep.subr.bf16.mxu0 0
    %823 = vmatpush1.bf16.msra.mxu0 0
    %824 = vmatprep.subr.bf16.mxu0 0
    %825 = vmatpush1.bf16.msra.mxu0 0
    %826 = vmatprep.subr.bf16.mxu0 0
    %827 = vmatpush1.bf16.msra.mxu0 0
    %828 = vmatprep.mubr.bf16.mxu0 0
    %829 = vmatmul.mubr.bf16.gmra.mrb[0].mxu0 %v671
    %v830 = vpop.f32.mrb[0].mxu0
    %v831 = vadd.f32 %v790, %v830
    %v832 = vpop.f32.mrb[0].mxu0
    %v833 = vadd.f32 %v792, %v832
    %v834 = vpop.f32.mrb[0].mxu0
    %v835 = vpop.f32.mrb[0].mxu0
    %836 = vdwg.mxu0
    %v837 = vmax.f32 %v831, 0.0
    %v838 = vmax.f32 %v833, 0.0
    %v839 = vpack.c.bf16 %v837, %v837
    %v840 = vpack.c.bf16 %v838, %v838
    %v841 = vld [vmem:[%s3] sm:$0xff]
    %v842 = vld [vmem:[%s3 + $0x8] sm:$0xff]
    %v843 = vld [vmem:[%s3 + $0x10] sm:$0xff]
    %v844 = vld [vmem:[%s3 + $0x18] sm:$0xff]
    %v845 = vld [vmem:[%s3 + $0x20] sm:$0xff]
    %v846 = vld [vmem:[%s3 + $0x28] sm:$0xff]
    %v847 = vld [vmem:[%s3 + $0x30] sm:$0xff]
    %v848 = vld [vmem:[%s3 + $0x38] sm:$0xff]
    %v849 = vld [vmem:[%s3 + $0x40] sm:$0xff]
    %v850 = vld [vmem:[%s3 + $0x48] sm:$0xff]
    %v851 = vld [vmem:[%s3 + $0x50] sm:$0xff]
    %v852 = vld [vmem:[%s3 + $0x58] sm:$0xff]
    %v853 = vld [vmem:[%s3 + $0x60] sm:$0xff]
    %v854 = vld [vmem:[%s3 + $0x68] sm:$0xff]
    %v855 = vld [vmem:[%s3 + $0x70] sm:$0xff]
    %v856 = vld [vmem:[%s3 + $0x78] sm:$0xff]
    %v857 = vld [vmem:[%s3 + $0x80] sm:$0xff]
    %v858 = vld [vmem:[%s3 + $0x88] sm:$0xff]
    %v859 = vld [vmem:[%s3 + $0x90] sm:$0xff]
    %v860 = vld [vmem:[%s3 + $0x98] sm:$0xff]
    %v861 = vld [vmem:[%s3 + $0xa0] sm:$0xff]
    %v862 = vld [vmem:[%s3 + $0xa8] sm:$0xff]
    %v863 = vld [vmem:[%s3 + $0xb0] sm:$0xff]
    %v864 = vld [vmem:[%s3 + $0xb8] sm:$0xff]
    %v865 = vld [vmem:[%s3 + $0xc0] sm:$0xff]
    %v866 = vld [vmem:[%s3 + $0xc8] sm:$0xff]
    %v867 = vld [vmem:[%s3 + $0xd0] sm:$0xff]
    %v868 = vld [vmem:[%s3 + $0xd8] sm:$0xff]
    %v869 = vld [vmem:[%s3 + $0xe0] sm:$0xff]
    %v870 = vld [vmem:[%s3 + $0xe8] sm:$0xff]
    %v871 = vld [vmem:[%s3 + $0xf0] sm:$0xff]
    %v872 = vld [vmem:[%s3 + $0xf8] sm:$0xff]
    %v873 = vld [vmem:[%s4] sm:$0x3]
    %v875 = vlaneseq
    %v876 = vshrl.u32 %v875, 7
    %v877 = vsub.s32 0, %v876
    %v878 = vrot.slane %v873, %v877
    %v879 = vlaneseq
    %v880 = vshrl.u32 %v879, 7
    %v881 = vsub.s32 1, %v880
    %v882 = vrot.slane %v873, %v881
    %v917 = vunpack.c.l.b16 %v841
    %v918 = vunpack.c.h.b16 %v841
    %v919 = vunpack.c.l.b16 %v842
    %v920 = vunpack.c.h.b16 %v842
    %v921 = vunpack.c.l.b16 %v843
    %v922 = vunpack.c.h.b16 %v843
    %v923 = vunpack.c.l.b16 %v844
    %v924 = vunpack.c.h.b16 %v844
    %v925 = vunpack.c.l.b16 %v845
    %v926 = vunpack.c.h.b16 %v845
    %v927 = vunpack.c.l.b16 %v846
    %v928 = vunpack.c.h.b16 %v846
    %v929 = vunpack.c.l.b16 %v847
    %v930 = vunpack.c.h.b16 %v847
    %v931 = vunpack.c.l.b16 %v848
    %v932 = vunpack.c.h.b16 %v848
    %v933 = vunpack.c.l.b16 %v849
    %v934 = vunpack.c.h.b16 %v849
    %v935 = vunpack.c.l.b16 %v850
    %v936 = vunpack.c.h.b16 %v850
    %v937 = vunpack.c.l.b16 %v851
    %v938 = vunpack.c.h.b16 %v851
    %v939 = vunpack.c.l.b16 %v852
    %v940 = vunpack.c.h.b16 %v852
    %v941 = vunpack.c.l.b16 %v853
    %v942 = vunpack.c.h.b16 %v853
    %v943 = vunpack.c.l.b16 %v854
    %v944 = vunpack.c.h.b16 %v854
    %v945 = vunpack.c.l.b16 %v855
    %v946 = vunpack.c.h.b16 %v855
    %v947 = vunpack.c.l.b16 %v856
    %v948 = vunpack.c.h.b16 %v856
    %v949 = vunpack.c.l.b16 %v857
    %v950 = vunpack.c.h.b16 %v857
    %v951 = vunpack.c.l.b16 %v858
    %v952 = vunpack.c.h.b16 %v858
    %v953 = vunpack.c.l.b16 %v859
    %v954 = vunpack.c.h.b16 %v859
    %v955 = vunpack.c.l.b16 %v860
    %v956 = vunpack.c.h.b16 %v860
    %v957 = vunpack.c.l.b16 %v861
    %v958 = vunpack.c.h.b16 %v861
    %v959 = vunpack.c.l.b16 %v862
    %v960 = vunpack.c.h.b16 %v862
    %v961 = vunpack.c.l.b16 %v863
    %v962 = vunpack.c.h.b16 %v863
    %v963 = vunpack.c.l.b16 %v864
    %v964 = vunpack.c.h.b16 %v864
    %v965 = vunpack.c.l.b16 %v865
    %v966 = vunpack.c.h.b16 %v865
    %v967 = vunpack.c.l.b16 %v866
    %v968 = vunpack.c.h.b16 %v866
    %v969 = vunpack.c.l.b16 %v867
    %v970 = vunpack.c.h.b16 %v867
    %v971 = vunpack.c.l.b16 %v868
    %v972 = vunpack.c.h.b16 %v868
    %v973 = vunpack.c.l.b16 %v869
    %v974 = vunpack.c.h.b16 %v869
    %v975 = vunpack.c.l.b16 %v870
    %v976 = vunpack.c.h.b16 %v870
    %v977 = vunpack.c.l.b16 %v871
    %v978 = vunpack.c.h.b16 %v871
    %v979 = vunpack.c.l.b16 %v872
    %v980 = vunpack.c.h.b16 %v872
    %v981 = vpack.c.b16 %v919, %v917
    %v982 = vpack.c.b16 %v920, %v918
    %v983 = vpack.c.b16 %v923, %v921
    %v984 = vpack.c.b16 %v924, %v922
    %v985 = vpack.c.b16 %v927, %v925
    %v986 = vpack.c.b16 %v928, %v926
    %v987 = vpack.c.b16 %v931, %v929
    %v988 = vpack.c.b16 %v932, %v930
    %v989 = vpack.c.b16 %v935, %v933
    %v990 = vpack.c.b16 %v936, %v934
    %v991 = vpack.c.b16 %v939, %v937
    %v992 = vpack.c.b16 %v940, %v938
    %v993 = vpack.c.b16 %v943, %v941
    %v994 = vpack.c.b16 %v944, %v942
    %v995 = vpack.c.b16 %v947, %v945
    %v996 = vpack.c.b16 %v948, %v946
    %v997 = vpack.c.b16 %v951, %v949
    %v998 = vpack.c.b16 %v952, %v950
    %v999 = vpack.c.b16 %v955, %v953
    %v1000 = vpack.c.b16 %v956, %v954
    %v1001 = vpack.c.b16 %v959, %v957
    %v1002 = vpack.c.b16 %v960, %v958
    %v1003 = vpack.c.b16 %v963, %v961
    %v1004 = vpack.c.b16 %v964, %v962
    %v1005 = vpack.c.b16 %v967, %v965
    %v1006 = vpack.c.b16 %v968, %v966
    %v1007 = vpack.c.b16 %v971, %v969
    %v1008 = vpack.c.b16 %v972, %v970
    %v1009 = vpack.c.b16 %v975, %v973
    %v1010 = vpack.c.b16 %v976, %v974
    %v1011 = vpack.c.b16 %v979, %v977
    %v1012 = vpack.c.b16 %v980, %v978
    %1045 = vmatprep.subr.bf16.mxu0 %v982
    %1046 = vmatpush1.bf16.msra.mxu0 %v981
    %1047 = vmatprep.subr.bf16.mxu0 %v984
    %1048 = vmatpush1.bf16.msra.mxu0 %v983
    %1049 = vmatprep.subr.bf16.mxu0 %v986
    %1050 = vmatpush1.bf16.msra.mxu0 %v985
    %1051 = vmatprep.subr.bf16.mxu0 %v988
    %1052 = vmatpush1.bf16.msra.mxu0 %v987
    %1053 = vmatprep.subr.bf16.mxu0 %v990
    %1054 = vmatpush1.bf16.msra.mxu0 %v989
    %1055 = vmatprep.subr.bf16.mxu0 %v992
    %1056 = vmatpush1.bf16.msra.mxu0 %v991
    %1057 = vmatprep.subr.bf16.mxu0 %v994
    %1058 = vmatpush1.bf16.msra.mxu0 %v993
    %1059 = vmatprep.subr.bf16.mxu0 %v996
    %1060 = vmatpush1.bf16.msra.mxu0 %v995
    %1061 = vmatprep.subr.bf16.mxu0 %v998
    %1062 = vmatpush1.bf16.msra.mxu0 %v997
    %1063 = vmatprep.subr.bf16.mxu0 %v1000
    %1064 = vmatpush1.bf16.msra.mxu0 %v999
    %1065 = vmatprep.subr.bf16.mxu0 %v1002
    %1066 = vmatpush1.bf16.msra.mxu0 %v1001
    %1067 = vmatprep.subr.bf16.mxu0 %v1004
    %1068 = vmatpush1.bf16.msra.mxu0 %v1003
    %1069 = vmatprep.subr.bf16.mxu0 %v1006
    %1070 = vmatpush1.bf16.msra.mxu0 %v1005
    %1071 = vmatprep.subr.bf16.mxu0 %v1008
    %1072 = vmatpush1.bf16.msra.mxu0 %v1007
    %1073 = vmatprep.subr.bf16.mxu0 %v1010
    %1074 = vmatpush1.bf16.msra.mxu0 %v1009
    %1075 = vmatprep.subr.bf16.mxu0 %v1012
    %1076 = vmatpush1.bf16.msra.mxu0 %v1011
    %1077 = vmatprep.mubr.bf16.mxu0 %v840
    %1078 = vmatmul.mubr.bf16.gmra.mrb[0].mxu0 %v839
    %v1079 = vpop.f32.mrb[0].mxu0
    %v1080 = vadd.f32 %v878, %v1079
    %v1081 = vpop.f32.mrb[0].mxu0
    %v1082 = vadd.f32 %v882, %v1081
    %v1083 = vpop.f32.mrb[0].mxu0
    %v1084 = vpop.f32.mrb[0].mxu0
    %1085 = vdwg.mxu0
    %v1086 = vmax.f32 %v1080, 0.0
    %v1087 = vmax.f32 %v1082, 0.0
    %v1088 = vpack.c.bf16 %v1086, %v1086
    %v1089 = vpack.c.bf16 %v1087, %v1087
    %v1090 = vld [vmem:[#allocation4] sm:$0xf]
    %v1091 = vld [vmem:[#allocation4 + $0x4] sm:$0xf]
    %v1092 = vld [vmem:[#allocation4 + $0x8] sm:$0xf]
    %v1093 = vld [vmem:[#allocation4 + $0xc] sm:$0xf]
    %v1094 = vld [vmem:[#allocation4 + $0x10] sm:$0xf]
    %v1095 = vld [vmem:[#allocation4 + $0x14] sm:$0xf]
    %v1096 = vld [vmem:[#allocation4 + $0x18] sm:$0xf]
    %v1097 = vld [vmem:[#allocation4 + $0x1c] sm:$0xf]
    %v1098 = vld [vmem:[#allocation4 + $0x20] sm:$0xf]
    %v1099 = vld [vmem:[#allocation4 + $0x24] sm:$0xf]
    %v1100 = vld [vmem:[#allocation4 + $0x28] sm:$0xf]
    %v1101 = vld [vmem:[#allocation4 + $0x2c] sm:$0xf]
    %v1102 = vld [vmem:[#allocation4 + $0x30] sm:$0xf]
    %v1103 = vld [vmem:[#allocation4 + $0x34] sm:$0xf]
    %v1104 = vld [vmem:[#allocation4 + $0x38] sm:$0xf]
    %v1105 = vld [vmem:[#allocation4 + $0x3c] sm:$0xf]
    %v1106 = vld [vmem:[#allocation4 + $0x40] sm:$0xf]
    %v1107 = vld [vmem:[#allocation4 + $0x44] sm:$0xf]
    %v1108 = vld [vmem:[#allocation4 + $0x48] sm:$0xf]
    %v1109 = vld [vmem:[#allocation4 + $0x4c] sm:$0xf]
    %v1110 = vld [vmem:[#allocation4 + $0x50] sm:$0xf]
    %v1111 = vld [vmem:[#allocation4 + $0x54] sm:$0xf]
    %v1112 = vld [vmem:[#allocation4 + $0x58] sm:$0xf]
    %v1113 = vld [vmem:[#allocation4 + $0x5c] sm:$0xf]
    %v1114 = vld [vmem:[#allocation4 + $0x60] sm:$0xf]
    %v1115 = vld [vmem:[#allocation4 + $0x64] sm:$0xf]
    %v1116 = vld [vmem:[#allocation4 + $0x68] sm:$0xf]
    %v1117 = vld [vmem:[#allocation4 + $0x6c] sm:$0xf]
    %v1118 = vld [vmem:[#allocation4 + $0x70] sm:$0xf]
    %v1119 = vld [vmem:[#allocation4 + $0x74] sm:$0xf]
    %v1120 = vld [vmem:[#allocation4 + $0x78] sm:$0xf]
    %v1121 = vld [vmem:[#allocation4 + $0x7c] sm:$0xf]
    %v1122 = vld [vmem:[%s6] sm:$0x1]
    %v1124 = vlaneseq
    %v1125 = vshrl.u32 %v1124, 7
    %v1126 = vsub.s32 0, %v1125
    %v1127 = vrot.slane %v1122, %v1126
    %v1161 = vunpack.c.l.b16 %v1090
    %v1162 = vunpack.c.l.b16 %v1091
    %v1163 = vunpack.c.l.b16 %v1092
    %v1164 = vunpack.c.l.b16 %v1093
    %v1165 = vunpack.c.l.b16 %v1094
    %v1166 = vunpack.c.l.b16 %v1095
    %v1167 = vunpack.c.l.b16 %v1096
    %v1168 = vunpack.c.l.b16 %v1097
    %v1169 = vunpack.c.l.b16 %v1098
    %v1170 = vunpack.c.l.b16 %v1099
    %v1171 = vunpack.c.l.b16 %v1100
    %v1172 = vunpack.c.l.b16 %v1101
    %v1173 = vunpack.c.l.b16 %v1102
    %v1174 = vunpack.c.l.b16 %v1103
    %v1175 = vunpack.c.l.b16 %v1104
    %v1176 = vunpack.c.l.b16 %v1105
    %v1177 = vunpack.c.l.b16 %v1106
    %v1178 = vunpack.c.l.b16 %v1107
    %v1179 = vunpack.c.l.b16 %v1108
    %v1180 = vunpack.c.l.b16 %v1109
    %v1181 = vunpack.c.l.b16 %v1110
    %v1182 = vunpack.c.l.b16 %v1111
    %v1183 = vunpack.c.l.b16 %v1112
    %v1184 = vunpack.c.l.b16 %v1113
    %v1185 = vunpack.c.l.b16 %v1114
    %v1186 = vunpack.c.l.b16 %v1115
    %v1187 = vunpack.c.l.b16 %v1116
    %v1188 = vunpack.c.l.b16 %v1117
    %v1189 = vunpack.c.l.b16 %v1118
    %v1190 = vunpack.c.l.b16 %v1119
    %v1191 = vunpack.c.l.b16 %v1120
    %v1192 = vunpack.c.l.b16 %v1121
    %v1193 = vpack.c.b16 %v1162, %v1161
    %v1194 = vpack.c.b16 %v1164, %v1163
    %v1195 = vpack.c.b16 %v1166, %v1165
    %v1196 = vpack.c.b16 %v1168, %v1167
    %v1197 = vpack.c.b16 %v1170, %v1169
    %v1198 = vpack.c.b16 %v1172, %v1171
    %v1199 = vpack.c.b16 %v1174, %v1173
    %v1200 = vpack.c.b16 %v1176, %v1175
    %v1201 = vpack.c.b16 %v1178, %v1177
    %v1202 = vpack.c.b16 %v1180, %v1179
    %v1203 = vpack.c.b16 %v1182, %v1181
    %v1204 = vpack.c.b16 %v1184, %v1183
    %v1205 = vpack.c.b16 %v1186, %v1185
    %v1206 = vpack.c.b16 %v1188, %v1187
    %v1207 = vpack.c.b16 %v1190, %v1189
    %v1208 = vpack.c.b16 %v1192, %v1191
    %1225 = vmatprep.subr.bf16.mxu0 0
    %1226 = vmatpush1.bf16.msra.mxu0 %v1193
    %1227 = vmatprep.subr.bf16.mxu0 0
    %1228 = vmatpush1.bf16.msra.mxu0 %v1194
    %1229 = vmatprep.subr.bf16.mxu0 0
    %1230 = vmatpush1.bf16.msra.mxu0 %v1195
    %1231 = vmatprep.subr.bf16.mxu0 0
    %1232 = vmatpush1.bf16.msra.mxu0 %v1196
    %1233 = vmatprep.subr.bf16.mxu0 0
    %1234 = vmatpush1.bf16.msra.mxu0 %v1197
    %1235 = vmatprep.subr.bf16.mxu0 0
    %1236 = vmatpush1.bf16.msra.mxu0 %v1198
    %1237 = vmatprep.subr.bf16.mxu0 0
    %1238 = vmatpush1.bf16.msra.mxu0 %v1199
    %1239 = vmatprep.subr.bf16.mxu0 0
    %1240 = vmatpush1.bf16.msra.mxu0 %v1200
    %1241 = vmatprep.subr.bf16.mxu0 0
    %1242 = vmatpush1.bf16.msra.mxu0 %v1201
    %1243 = vmatprep.subr.bf16.mxu0 0
    %1244 = vmatpush1.bf16.msra.mxu0 %v1202
    %1245 = vmatprep.subr.bf16.mxu0 0
    %1246 = vmatpush1.bf16.msra.mxu0 %v1203
    %1247 = vmatprep.subr.bf16.mxu0 0
    %1248 = vmatpush1.bf16.msra.mxu0 %v1204
    %1249 = vmatprep.subr.bf16.mxu0 0
    %1250 = vmatpush1.bf16.msra.mxu0 %v1205
    %1251 = vmatprep.subr.bf16.mxu0 0
    %1252 = vmatpush1.bf16.msra.mxu0 %v1206
    %1253 = vmatprep.subr.bf16.mxu0 0
    %1254 = vmatpush1.bf16.msra.mxu0 %v1207
    %1255 = vmatprep.subr.bf16.mxu0 0
    %1256 = vmatpush1.bf16.msra.mxu0 %v1208
    %1257 = vmatprep.mubr.bf16.mxu0 %v1089
    %1258 = vmatmul.mubr.bf16.gmra.mrb[0].mxu0 %v1088
    %v1259 = vpop.f32.mrb[0].mxu0
    %v1260 = vadd.f32 %v1127, %v1259
    %v1261 = vpop.f32.mrb[0].mxu0
    %v1262 = vpop.f32.mrb[0].mxu0
    %v1263 = vpop.f32.mrb[0].mxu0
    %1264 = vdwg.mxu0
    %1265 = vst [vmem:[%s7] sm:$0xff] %v1260
    // Predicated region
    $region38: #{dense2_forward.1} parent=1 // pred_check
      _
    $region39: #{dense2_forward.1} parent=1 // pred_check_branch
      %1267 = sbr.rel (0) target = $region41
    $region40: #{dense2_forward.1} parent=1 // pred_region
      _
    $region41: #{dense2_forward.1} parent=1 // pred_fallthru
      _
    // Predicated region
    $region42: #{dense2_forward.1} parent=1 // pred_check
      _
    $region43: #{dense2_forward.1} parent=1 // pred_check_branch
      %1269 = sbr.rel (0) target = $region45
    $region44: #{dense2_forward.1} parent=1 // pred_region
      _
    $region45: #{dense2_forward.1} parent=1 // pred_fallthru
      _
    %1270 = vsyncpa [#allocation3], 1
    %1271 = vsyncpa [#allocation5], 1

</llo_original>
